<compile_context>
chip_gen: v6e
topology: v6e:2x2x1
jax: 0.10.0
libtpu: 0.0.40
codegen_flags: <defaults>
</compile_context>

<pallas_src>
import functools
from typing import NamedTuple

import jax
import jax.numpy as jnp
from jax.experimental import pallas as pl
from jax.experimental.pallas import tpu as pltpu

_MIN_VMEM_LIMIT = 32 << 20


def _round_up(x, m):
    return ((x + m - 1) // m) * m


# --------------------------- chip-aware tiling knobs ---------------------------
class _Chip(NamedTuple):
    block_bytes: int   # per-grid-step block-byte target
    vmem_cap: int      # upper bound for vmem_limit_bytes requests
    two_cores: bool    # 2 TensorCores per chip (v7x) -> CORE_PARALLEL


def _chip() -> _Chip:
    kind = ""
    try:
        kind = jax.devices()[0].device_kind.lower()
    except Exception:
        pass
    if "v7" in kind:
        # v7x: 64 MiB VMEM/TC (leave compiler headroom), ~3.2 TB/s HBM -> bigger
        # blocks, and 2 TensorCores -> CORE_PARALLEL on the leading grid axis.
        return _Chip(8 << 20, 56 << 20, True)
    if "v5 lite" in kind or "v5e" in kind or "v5lite" in kind:
        # v5e: 128 MiB physical VMEM but only a 16 MiB scoped default -> raise it.
        return _Chip(3 << 20, 100 << 20, False)
    # v6e / other single-TensorCore parts (128 MiB physical VMEM).
    return _Chip(4 << 20, 100 << 20, False)


def _padded_bytes(shape, itemsize=4):
    """VMEM footprint of one block, padded to the (8, 128) tile grid."""
    if len(shape) == 1:
        return _round_up(int(shape[0]), 128) * 8 * itemsize
    lead = 1
    for d in shape[:-2]:
        lead *= int(d)
    return lead * _round_up(int(shape[-2]), 8) * _round_up(int(shape[-1]), 128) * itemsize


def _vmem_limit(chip, block_shapes):
    # ~2x for double-buffering of each pipelined block + slack for params/scratch.
    need = sum(_padded_bytes(s) for s in block_shapes)
    need = int(2.5 * need) + (4 << 20)
    return max(_MIN_VMEM_LIMIT, min(chip.vmem_cap, need))


def _leading_axis_semantics(chip, axis_size):
    # Only CORE_PARALLEL/SUBCORE_PARALLEL actually shard a grid axis across the
    # two TensorCores of a v7x chip; plain "parallel" changes nothing there.
    if chip.two_cores and axis_size >= 2:
        return pltpu.CORE_PARALLEL
    return pltpu.PARALLEL


# ----------------------------- LayerNorm: channels_last -----------------------------
def _ln_rows_kernel(x_ref, w_ref, b_ref, o_ref, *, eps):
    # x_ref: (rows, C); normalize each row over C. One-pass stats.
    x = x_ref[...].astype(jnp.float32)
    inv_c = 1.0 / x.shape[-1]
    mean = jnp.sum(x, axis=-1, keepdims=True) * inv_c
    ex2 = jnp.sum(x * x, axis=-1, keepdims=True) * inv_c
    inv = jax.lax.rsqrt(ex2 - mean * mean + eps)           # biased var (matches torch)
    w = w_ref[...].astype(jnp.float32)
    b = b_ref[...].astype(jnp.float32)
    o_ref[...] = ((x - mean) * inv * w + b).astype(o_ref.dtype)


def _pick_block_rows(R, C, chip):
    if R <= 8:
        return R
    row_bytes = 2 * _round_up(C, 128) * 4                  # in + out tile per row
    target = max(8, (chip.block_bytes // row_bytes) // 8 * 8)
    if chip.two_cores and R > 16:
        # >=2 grid steps so CORE_PARALLEL can split across both TensorCores.
        target = min(target, _round_up(pl.cdiv(R, 2), 8))
    return R if target >= R else target


def _layer_norm_channels_last(x2d, weight, bias, eps, block_rows=None):
    R, C = x2d.shape
    chip = _chip()
    br = block_rows if block_rows is not None else _pick_block_rows(R, C, chip)
    br = min(br, R)
    if br < R:
        br = max(8, (br // 8) * 8)
    steps = pl.cdiv(R, br)
    return pl.pallas_call(
        functools.partial(_ln_rows_kernel, eps=eps),
        out_shape=jax.ShapeDtypeStruct((R, C), x2d.dtype),
        grid_spec=pltpu.PrefetchScalarGridSpec(
            num_scalar_prefetch=0,
            grid=(steps,),
            in_specs=[
                pl.BlockSpec((br, C), lambda i: (i, 0)),
                pl.BlockSpec((1, C), lambda i: (0, 0)),
                pl.BlockSpec((1, C), lambda i: (0, 0)),
            ],
            out_specs=pl.BlockSpec((br, C), lambda i: (i, 0)),
        ),
        compiler_params=pltpu.CompilerParams(
            dimension_semantics=(_leading_axis_semantics(chip, steps),),
            vmem_limit_bytes=_vmem_limit(chip, [(br, C), (br, C), (1, C), (1, C)]),
        ),
    )(x2d, weight.reshape(1, C), bias.reshape(1, C))


# ----------------------------- LayerNorm: channels_first ----------------------------
def _ln_cf_kernel(x_ref, w_ref, b_ref, o_ref, *, eps):
    # x_ref: (nb, C, t_hw) -- C on sublanes (reduce axis), H*W on lanes.
    x = x_ref[...].astype(jnp.float32)
    inv_c = 1.0 / x.shape[1]
    mean = jnp.sum(x, axis=1, keepdims=True) * inv_c
    ex2 = jnp.sum(x * x, axis=1, keepdims=True) * inv_c
    inv = jax.lax.rsqrt(ex2 - mean * mean + eps)
    w = w_ref[...].astype(jnp.float32)                     # (1, C, 1)
    b = b_ref[...].astype(jnp.float32)
    o_ref[...] = ((x - mean) * inv * w + b).astype(o_ref.dtype)


def _pick_cf_blocks(N, C, HW, chip):
    c_pad = _round_up(C, 8)
    budget = chip.block_bytes // 2                         # half for in, half for out
    per_image = c_pad * _round_up(HW, 128) * 4
    if per_image <= budget:
        nb = max(1, min(N, budget // per_image))           # batch images per grid step
        return nb, HW
    t_hw = max(128, (budget // (c_pad * 4)) // 128 * 128)
    return 1, min(t_hw, HW)


def _layer_norm_channels_first(x, weight, bias, eps, block_hw=None):
    N, C, H, W = x.shape
    HW = H * W
    chip = _chip()
    nb, t_hw = _pick_cf_blocks(N, C, HW, chip)
    if block_hw is not None:
        t_hw = min(block_hw, HW)
        nb = 1
    x3 = x.reshape(N, C, HW)                               # contiguous, no transpose
    gb = pl.cdiv(N, nb)
    gh = pl.cdiv(HW, t_hw)
    out = pl.pallas_call(
        functools.partial(_ln_cf_kernel, eps=eps),
        out_shape=jax.ShapeDtypeStruct((N, C, HW), x.dtype),
        grid_spec=pltpu.PrefetchScalarGridSpec(
            num_scalar_prefetch=0,
            grid=(gb, gh),
            in_specs=[
                pl.BlockSpec((nb, C, t_hw), lambda i, j: (i, 0, j)),
                pl.BlockSpec((1, C, 1), lambda i, j: (0, 0, 0)),
                pl.BlockSpec((1, C, 1), lambda i, j: (0, 0, 0)),
            ],
            out_specs=pl.BlockSpec((nb, C, t_hw), lambda i, j: (i, 0, j)),
        ),
        compiler_params=pltpu.CompilerParams(
            dimension_semantics=(_leading_axis_semantics(chip, gb), pltpu.PARALLEL),
            vmem_limit_bytes=_vmem_limit(chip, [(nb, C, t_hw), (nb, C, t_hw)]),
        ),
    )(x3, weight.reshape(1, C, 1), bias.reshape(1, C, 1))
    return out.reshape(N, C, H, W)


class LayerNormPallas:
    """Pallas mirror of the ConvNeXtV2 LayerNorm (channels_last / channels_first)."""

    def __init__(self, normalized_shape, eps=1e-6, data_format="channels_last"):
        if data_format not in ("channels_last", "channels_first"):
            raise NotImplementedError
        self.weight = jnp.ones((normalized_shape,), jnp.float32)
        self.bias = jnp.zeros((normalized_shape,), jnp.float32)
        self.eps = eps
        self.data_format = data_format
        self.normalized_shape = (normalized_shape,)

    def __call__(self, x, block_rows=None, block_hw=None):
        C = self.normalized_shape[0]
        if self.data_format == "channels_last":
            shape = x.shape
            assert shape[-1] == C
            y = _layer_norm_channels_last(x.reshape(-1, C), self.weight, self.bias,
                                          self.eps, block_rows=block_rows)
            return y.reshape(shape)
        assert x.shape[1] == C
        return _layer_norm_channels_first(x, self.weight, self.bias, self.eps,
                                          block_hw=block_hw)


# --------------------- fused Block tail: LN -> pw1 -> GELU -> GRN -> pw2 ---------------------
_SQRT_HALF = 0.7071067811865476


def _erf(x):
    # Abramowitz & Stegun 7.1.26 (max abs err ~1.5e-7); avoids relying on a
    # native erf lowering inside Mosaic.
    a1, a2, a3, a4, a5 = 0.254829592, -0.284496736, 1.421413741, -1.453152027, 1.061405429
    p = 0.3275911
    sign = jnp.where(x >= 0.0, 1.0, -1.0)
    z = jnp.abs(x)
    t = 1.0 / (1.0 + p * z)
    poly = ((((a5 * t + a4) * t + a3) * t + a2) * t + a1) * t
    return sign * (1.0 - poly * jnp.exp(-z * z))


def _gelu_exact(x):
    return 0.5 * x * (1.0 + _erf(x * _SQRT_HALF))


def _ln_pw1_gelu_kernel(x_ref, lnw_ref, lnb_ref, w1_ref, b1_ref,
                        h_ref, gx2_ref, *, eps, hw_total):
    # Pass 1: LayerNorm over C, pwconv1 matmul, exact GELU; also accumulate the
    # per-image GRN statistic sum_{hw} h^2 per hidden channel.
    t = pl.program_id(1)
    rows = x_ref.shape[0]

    x = x_ref[...].astype(jnp.float32)                     # (rows, C)
    inv_c = 1.0 / x.shape[-1]
    mean = jnp.sum(x, axis=-1, keepdims=True) * inv_c
    ex2 = jnp.sum(x * x, axis=-1, keepdims=True) * inv_c
    inv = jax.lax.rsqrt(ex2 - mean * mean + eps)
    xn = (x - mean) * inv * lnw_ref[...].astype(jnp.float32) + lnb_ref[...].astype(jnp.float32)

    h = jnp.dot(xn, w1_ref[...].astype(jnp.float32),
                preferred_element_type=jnp.float32) + b1_ref[...].astype(jnp.float32)
    h = _gelu_exact(h)                                     # (rows, 4C)
    h_ref[...] = h.astype(h_ref.dtype)

    # Mask rows beyond HW (partial last tile) so garbage never reaches the stats.
    row_ids = jax.lax.broadcasted_iota(jnp.int32, (rows, 1), 0) + t * rows
    hm = jnp.where(row_ids < hw_total, h, 0.0)

    @pl.when(t == 0)
    def _init():
        gx2_ref[...] = jnp.zeros_like(gx2_ref)

    gx2_ref[...] += jnp.sum(hm * hm, axis=0, keepdims=True)


def _grn_pw2_res_kernel(h_ref, gx2_ref, gam_ref, bet_ref, w2_ref, b2_ref, r_ref,
                        o_ref, *, grn_eps):
    # Pass 2: GRN (using the per-image stats), pwconv2 matmul, bias, residual add.
    gx = jnp.sqrt(gx2_ref[...].astype(jnp.float32))        # (1, 4C)
    nx = gx / (jnp.mean(gx, axis=-1, keepdims=True) + grn_eps)
    h = h_ref[...].astype(jnp.float32)                     # (rows, 4C)
    g = gam_ref[...].astype(jnp.float32) * (h * nx) + bet_ref[...].astype(jnp.float32) + h
    y = jnp.dot(g, w2_ref[...].astype(jnp.float32), preferred_element_type=jnp.float32)
    y = y + b2_ref[...].astype(jnp.float32) + r_ref[...].astype(jnp.float32)
    o_ref[...] = y.astype(o_ref.dtype)


def _pick_fused_rows(HW, C, H4, chip, block_rows=None):
    if block_rows is None:
        # per-row traffic: x + resid (read) + h (write then read) + y (write)
        bytes_per_row = (2 * _round_up(C, 128) + 2 * _round_up(H4, 128)) * 4
        block_rows = max(8, (chip.block_bytes // bytes_per_row) // 8 * 8)
    if block_rows >= HW:
        return HW
    return max(8, (block_rows // 8) * 8)


def convnext_block_mlp(x_nhwc, resid_nhwc, ln_w, ln_b, w1, b1, gamma, beta, w2, b2,
                       eps=1e-6, grn_eps=1e-4, block_rows=None):
    """Fused ConvNeXtV2 Block tail: LN -> pwconv1 -> GELU -> GRN -> pwconv2 + residual."""
    N, H, W, C = x_nhwc.shape
    HW = H * W
    H4 = w1.shape[1]
    chip = _chip()
    rows = _pick_fused_rows(HW, C, H4, chip, block_rows)
    steps = pl.cdiv(HW, rows)
    n_sem = _leading_axis_semantics(chip, N)

    x3 = x_nhwc.reshape(N, HW, C)
    r3 = resid_nhwc.reshape(N, HW, C)

    h, gx2 = pl.pallas_call(
        functools.partial(_ln_pw1_gelu_kernel, eps=eps, hw_total=HW),
        out_shape=(jax.ShapeDtypeStruct((N, HW, H4), x_nhwc.dtype),
                   jax.ShapeDtypeStruct((N, 1, H4), jnp.float32)),
        grid_spec=pltpu.PrefetchScalarGridSpec(
            num_scalar_prefetch=0,
            grid=(N, steps),
            in_specs=[
                pl.BlockSpec((None, rows, C), lambda n, t: (n, t, 0)),
                pl.BlockSpec((1, C), lambda n, t: (0, 0)),
                pl.BlockSpec((1, C), lambda n, t: (0, 0)),
                pl.BlockSpec((C, H4), lambda n, t: (0, 0)),
                pl.BlockSpec((1, H4), lambda n, t: (0, 0)),
            ],
            out_specs=[
                pl.BlockSpec((None, rows, H4), lambda n, t: (n, t, 0)),
                pl.BlockSpec((None, 1, H4), lambda n, t: (n, 0, 0)),  # per-image accumulator
            ],
        ),
        compiler_params=pltpu.CompilerParams(
            dimension_semantics=(n_sem, pltpu.ARBITRARY),
            vmem_limit_bytes=_vmem_limit(
                chip, [(rows, C), (rows, H4), (C, H4), (1, H4), (1, H4)]),
        ),
    )(x3, ln_w.reshape(1, C), ln_b.reshape(1, C), w1, b1.reshape(1, H4))

    y3 = pl.pallas_call(
        functools.partial(_grn_pw2_res_kernel, grn_eps=grn_eps),
        out_shape=jax.ShapeDtypeStruct((N, HW, C), x_nhwc.dtype),
        grid_spec=pltpu.PrefetchScalarGridSpec(
            num_scalar_prefetch=0,
            grid=(N, steps),
            in_specs=[
                pl.BlockSpec((None, rows, H4), lambda n, t: (n, t, 0)),
                pl.BlockSpec((None, 1, H4), lambda n, t: (n, 0, 0)),
                pl.BlockSpec((1, H4), lambda n, t: (0, 0)),
                pl.BlockSpec((1, H4), lambda n, t: (0, 0)),
                pl.BlockSpec((H4, C), lambda n, t: (0, 0)),
                pl.BlockSpec((1, C), lambda n, t: (0, 0)),
                pl.BlockSpec((None, rows, C), lambda n, t: (n, t, 0)),
            ],
            out_specs=pl.BlockSpec((None, rows, C), lambda n, t: (n, t, 0)),
        ),
        compiler_params=pltpu.CompilerParams(
            dimension_semantics=(n_sem, pltpu.PARALLEL),
            vmem_limit_bytes=_vmem_limit(
                chip, [(rows, H4), (rows, C), (rows, C), (H4, C), (1, H4)]),
        ),
    )(h, gx2, gamma.reshape(1, H4), beta.reshape(1, H4), w2, b2.reshape(1, C), r3)

    return y3.reshape(N, H, W, C)


# --------------------------------- ConvNeXtV2 Block ---------------------------------
def _depthwise_conv7x7(x, w, b):
    dim = x.shape[1]
    y = jax.lax.conv_general_dilated(
        x, w, window_strides=(1, 1), padding=((3, 3), (3, 3)),
        dimension_numbers=("NCHW", "OIHW", "NCHW"), feature_group_count=dim)
    return y + b[None, :, None, None]


class ConvNeXtBlockPallas:
    """ConvNeXtV2 Block: XLA depthwise conv + fused Pallas LN/pwconv1/GELU/GRN/pwconv2."""

    def __init__(self, dim, key):
        k1, k2, k3, k4 = jax.random.split(key, 4)
        self.dim = dim
        self.dw_w = 0.02 * jax.random.normal(k1, (dim, 1, 7, 7), jnp.float32)
        self.dw_b = 0.01 * jax.random.normal(k2, (dim,), jnp.float32)
        self.ln_w = 1.0 + 0.05 * jnp.sin(jnp.arange(dim, dtype=jnp.float32))
        self.ln_b = 0.02 * jnp.cos(jnp.arange(dim, dtype=jnp.float32))
        self.w1 = 0.02 * jax.random.normal(k3, (dim, 4 * dim), jnp.float32)
        self.b1 = 0.01 * jnp.sin(jnp.arange(4 * dim, dtype=jnp.float32))
        # GRN gamma/beta are zero-init in the paper; use non-zero values here so
        # the test actually exercises the GRN path.
        self.gamma = 0.1 + 0.02 * jnp.cos(jnp.arange(4 * dim, dtype=jnp.float32))
        self.beta = 0.01 * jnp.sin(jnp.arange(4 * dim, dtype=jnp.float32))
        self.w2 = 0.02 * jax.random.normal(k4, (4 * dim, dim), jnp.float32)
        self.b2 = 0.005 * jnp.cos(jnp.arange(dim, dtype=jnp.float32))
        self.eps = 1e-6

    def __call__(self, x, block_rows=None):
        inp = x
        # TODO(synk): the 7x7 depthwise conv stays an XLA conv (not a Pallas kernel).
        xd = _depthwise_conv7x7(x, self.dw_w, self.dw_b)
        x_nhwc = jnp.transpose(xd, (0, 2, 3, 1))
        r_nhwc = jnp.transpose(inp, (0, 2, 3, 1))
        y = convnext_block_mlp(x_nhwc, r_nhwc, self.ln_w, self.ln_b, self.w1, self.b1,
                               self.gamma, self.beta, self.w2, self.b2,
                               eps=self.eps, block_rows=block_rows)
        return jnp.transpose(y, (0, 3, 1, 2))


# ------------------------------------ references ------------------------------------
def _ref_ln_channels_last(x, w, b, eps):
    mean = jnp.mean(x, axis=-1, keepdims=True)
    var = jnp.mean((x - mean) ** 2, axis=-1, keepdims=True)
    return (x - mean) / jnp.sqrt(var + eps) * w + b


def _ref_ln_channels_first(x, w, b, eps):
    u = jnp.mean(x, axis=1, keepdims=True)
    s = jnp.mean((x - u) ** 2, axis=1, keepdims=True)
    xh = (x - u) / jnp.sqrt(s + eps)
    return w[None, :, None, None] * xh + b[None, :, None, None]


def _ref_block(x, blk):
    xd = _depthwise_conv7x7(x, blk.dw_w, blk.dw_b)
    xh = jnp.transpose(xd, (0, 2, 3, 1))
    rh = jnp.transpose(x, (0, 2, 3, 1))
    xn = _ref_ln_channels_last(xh, blk.ln_w, blk.ln_b, blk.eps)
    h = xn @ blk.w1 + blk.b1
    h = jax.nn.gelu(h, approximate=False)
    gx = jnp.sqrt(jnp.sum(h * h, axis=(1, 2), keepdims=True))
    nx = gx / (jnp.mean(gx, axis=-1, keepdims=True) + 1e-4)
    h = blk.gamma * (h * nx) + blk.beta + h
    y = h @ blk.w2 + blk.b2 + rh
    return jnp.transpose(y, (0, 3, 1, 2))


# ---------------------------------------- main ----------------------------------------
if __name__ == "__main__":
    # Make the XLA reference matmuls full-f32 so kernel/reference agree tightly.
    jax.config.update("jax_default_matmul_precision", "highest")
    key = jax.random.PRNGKey(0)
    k = jax.random.split(key, 8)

    # ---- channels_first LayerNorm (stem / downsample style), C = 4 ----
    x = jax.random.normal(k[0], (2, 4, 16, 16), jnp.float32)
    ln = LayerNormPallas(4, eps=1e-6, data_format="channels_first")
    ln.weight = 1.0 + 0.1 * jnp.arange(4, dtype=jnp.float32)
    ln.bias = 0.01 * jnp.arange(4, dtype=jnp.float32)
    y = jax.block_until_ready(ln(x))
    assert y.shape == x.shape
    assert jnp.allclose(y, _ref_ln_channels_first(x, ln.weight, ln.bias, ln.eps),
                        atol=1e-4, rtol=1e-4)

    # ---- channels_first, C = 96 (ConvNeXt stem dim), small HW -> multi-image blocks ----
    x = jax.random.normal(k[1], (2, 96, 8, 8), jnp.float32)
    ln = LayerNormPallas(96, eps=1e-6, data_format="channels_first")
    ln.weight = 1.0 + 0.02 * jnp.arange(96, dtype=jnp.float32)
    ln.bias = -0.01 * jnp.arange(96, dtype=jnp.float32)
    y = jax.block_until_ready(ln(x))
    assert jnp.allclose(y, _ref_ln_channels_first(x, ln.weight, ln.bias, ln.eps),
                        atol=1e-4, rtol=1e-4)

    # ---- channels_first with forced spatial tiling (partial last lane block) ----
    x = jax.random.normal(k[2], (1, 32, 16, 20), jnp.float32)   # HW = 320 -> 128,128,64
    ln = LayerNormPallas(32, eps=1e-6, data_format="channels_first")
    y = jax.block_until_ready(ln(x, block_hw=128))
    assert jnp.allclose(y, _ref_ln_channels_first(x, ln.weight, ln.bias, ln.eps),
                        atol=1e-4, rtol=1e-4)

    # ---- channels_last, C = 32, forced row tiling (partial last row block) ----
    x = jax.random.normal(k[3], (2, 7, 9, 32), jnp.float32)     # R = 126 -> 48,48,30
    ln = LayerNormPallas(32, eps=1e-6, data_format="channels_last")
    ln.weight = 1.0 + 0.05 * jnp.arange(32, dtype=jnp.float32)
    ln.bias = -0.02 * jnp.arange(32, dtype=jnp.float32)
    y = jax.block_until_ready(ln(x, block_rows=48))
    assert jnp.allclose(y, _ref_ln_channels_last(x, ln.weight, ln.bias, ln.eps),
                        atol=1e-4, rtol=1e-4)

    # ---- channels_last, C = 768 (final-norm dim), tiny row count ----
    x = jax.random.normal(k[4], (2, 2, 2, 768), jnp.float32)
    ln = LayerNormPallas(768, eps=1e-6, data_format="channels_last")
    ln.weight = 1.0 + 0.001 * jnp.arange(768, dtype=jnp.float32)
    ln.bias = 0.0005 * jnp.arange(768, dtype=jnp.float32)
    y = jax.block_until_ready(ln(x))
    assert jnp.allclose(y, _ref_ln_channels_last(x, ln.weight, ln.bias, ln.eps),
                        atol=1e-4, rtol=1e-4)

    # ---- fused ConvNeXtV2 block, dim = 96 (stage-0 dim), single spatial tile ----
    blk = ConvNeXtBlockPallas(96, k[5])
    x = jax.random.normal(k[6], (2, 96, 8, 8), jnp.float32)
    y = jax.block_until_ready(blk(x))
    assert y.shape == x.shape
    assert jnp.allclose(y, _ref_block(x, blk), atol=1e-3, rtol=1e-3)

    # ---- fused block, dim = 32, forced row tiling (GRN accumulator + partial-tile mask) ----
    blk = ConvNeXtBlockPallas(32, k[7])
    x = jax.random.normal(k[0], (2, 32, 13, 13), jnp.float32)   # HW = 169 -> 64,64,41
    y = jax.block_until_ready(blk(x, block_rows=64))
    assert y.shape == x.shape
    assert jnp.allclose(y, _ref_block(x, blk), atol=1e-3, rtol=1e-3)

    print("KERNEL_OK")
</pallas_src>

<mosaic_0001>
module attributes {stable_mosaic.version = 11 : i64} {
  func.func @_ln_cf_kernel(%arg0: i32, %arg1: i32, %arg2: memref<2x4x256xf32, #tpu.memory_space<vmem>>, %arg3: memref<1x4x1xf32, #tpu.memory_space<vmem>>, %arg4: memref<1x4x1xf32, #tpu.memory_space<vmem>>, %arg5: memref<2x4x256xf32, #tpu.memory_space<vmem>>) attributes {dimension_semantics = [#tpu.dimension_semantics<parallel>, #tpu.dimension_semantics<parallel>], iteration_bounds = array<i64: 1, 1>, scalar_prefetch = 0 : i64, scratch_operands = 0 : i64, tpu.core_type = #tpu.core_type<tc>, window_params = [{transform_indices = @transform_0, window_bounds = array<i64: 2, 4, 256>}, {pipeline_mode = #tpu.pipeline_mode<synchronous>, transform_indices = @transform_1, window_bounds = array<i64: 1, 4, 1>}, {pipeline_mode = #tpu.pipeline_mode<synchronous>, transform_indices = @transform_2, window_bounds = array<i64: 1, 4, 1>}, {transform_indices = @transform_3, window_bounds = array<i64: 2, 4, 256>}]} {
    %c0 = arith.constant 0 : index
    %c0_0 = arith.constant 0 : index
    %c0_1 = arith.constant 0 : index
    %0 = vector.load %arg2[%c0, %c0_0, %c0_1] : memref<2x4x256xf32, #tpu.memory_space<vmem>>, vector<2x4x256xf32>
    %cst = arith.constant dense<0.000000e+00> : vector<2x256xf32>
    %1 = vector.multi_reduction <add>, %0, %cst [1] : vector<2x4x256xf32> to vector<2x256xf32>
    %2 = vector.shape_cast %1 : vector<2x256xf32> to vector<2x1x256xf32>
    %cst_2 = arith.constant 2.500000e-01 : f32
    %3 = vector.broadcast %cst_2 : f32 to vector<2x1x256xf32>
    %4 = arith.mulf %2, %3 : vector<2x1x256xf32>
    %5 = arith.mulf %0, %0 : vector<2x4x256xf32>
    %cst_3 = arith.constant dense<0.000000e+00> : vector<2x256xf32>
    %6 = vector.multi_reduction <add>, %5, %cst_3 [1] : vector<2x4x256xf32> to vector<2x256xf32>
    %7 = vector.shape_cast %6 : vector<2x256xf32> to vector<2x1x256xf32>
    %cst_4 = arith.constant 2.500000e-01 : f32
    %8 = vector.broadcast %cst_4 : f32 to vector<2x1x256xf32>
    %9 = arith.mulf %7, %8 : vector<2x1x256xf32>
    %10 = arith.mulf %4, %4 : vector<2x1x256xf32>
    %11 = arith.subf %9, %10 : vector<2x1x256xf32>
    %cst_5 = arith.constant 9.99999997E-7 : f32
    %12 = vector.broadcast %cst_5 : f32 to vector<2x1x256xf32>
    %13 = arith.addf %11, %12 : vector<2x1x256xf32>
    %14 = math.rsqrt %13 : vector<2x1x256xf32>
    %c0_6 = arith.constant 0 : index
    %c0_7 = arith.constant 0 : index
    %c0_8 = arith.constant 0 : index
    %15 = vector.load %arg3[%c0_6, %c0_7, %c0_8] : memref<1x4x1xf32, #tpu.memory_space<vmem>>, vector<1x4x1xf32>
    %c0_9 = arith.constant 0 : index
    %c0_10 = arith.constant 0 : index
    %c0_11 = arith.constant 0 : index
    %16 = vector.load %arg4[%c0_9, %c0_10, %c0_11] : memref<1x4x1xf32, #tpu.memory_space<vmem>>, vector<1x4x1xf32>
    %17 = vector.broadcast %4 : vector<2x1x256xf32> to vector<2x4x256xf32>
    %18 = arith.subf %0, %17 : vector<2x4x256xf32>
    %19 = vector.broadcast %14 : vector<2x1x256xf32> to vector<2x4x256xf32>
    %20 = arith.mulf %18, %19 : vector<2x4x256xf32>
    %21 = vector.broadcast %15 : vector<1x4x1xf32> to vector<2x4x256xf32>
    %22 = arith.mulf %20, %21 : vector<2x4x256xf32>
    %23 = vector.broadcast %16 : vector<1x4x1xf32> to vector<2x4x256xf32>
    %24 = arith.addf %22, %23 : vector<2x4x256xf32>
    %c0_12 = arith.constant 0 : index
    %c0_13 = arith.constant 0 : index
    %c0_14 = arith.constant 0 : index
    %25 = vector.load %arg5[%c0_12, %c0_13, %c0_14] : memref<2x4x256xf32, #tpu.memory_space<vmem>>, vector<2x4x256xf32>
    tpu.vector_store %arg5[%c0_12, %c0_13, %c0_14], %24 {strides = array<i32>} : memref<2x4x256xf32, #tpu.memory_space<vmem>>, vector<2x4x256xf32>,
    return
  }
  func.func @transform_0(%arg0: i32, %arg1: i32) -> (i32, i32, i32) {
    %c0_i32 = arith.constant 0 : i32
    %c0_i32_0 = arith.constant 0 : i32
    return %arg0, %c0_i32, %arg1 : i32, i32, i32
  }
  func.func @transform_1(%arg0: i32, %arg1: i32) -> (i32, i32, i32) {
    %c0_i32 = arith.constant 0 : i32
    %c0_i32_0 = arith.constant 0 : i32
    %c0_i32_1 = arith.constant 0 : i32
    %c0_i32_2 = arith.constant 0 : i32
    return %c0_i32, %c0_i32_0, %c0_i32_1 : i32, i32, i32
  }
  func.func @transform_2(%arg0: i32, %arg1: i32) -> (i32, i32, i32) {
    %c0_i32 = arith.constant 0 : i32
    %c0_i32_0 = arith.constant 0 : i32
    %c0_i32_1 = arith.constant 0 : i32
    %c0_i32_2 = arith.constant 0 : i32
    return %c0_i32, %c0_i32_0, %c0_i32_1 : i32, i32, i32
  }
  func.func @transform_3(%arg0: i32, %arg1: i32) -> (i32, i32, i32) {
    %c0_i32 = arith.constant 0 : i32
    %c0_i32_0 = arith.constant 0 : i32
    return %arg0, %c0_i32, %arg1 : i32, i32, i32
  }
}

</mosaic_0001>

<llo_original>
// kernel: tpu_custom_call.1
$region0: #{tpu_custom_call.1}
  #allocation0 [shape = 'u32[]', space=smem, size = 0x4, offset = 0x4, fixed_abs, tag = 'smem constant byte address 0x4 - core index']
  #allocation1 [shape = 'u32[144,128]{1,0:T(1,128)}', space=vmem, size = 0x12000, scoped, tag = 'internal scratch']
  %s0 = inlined_call_operand.hbm [shape: f32[2,4,256], index: 0, kind: input, shape index: {}]
  %s1 = inlined_call_operand.vmem [shape: f32[1,4,1], index: 1, kind: input, shape index: {}]
  %s2 = inlined_call_operand.vmem [shape: f32[1,4,1], index: 2, kind: input, shape index: {}]
  %s3 = inlined_call_operand.hbm [shape: f32[2,4,256], index: 3, kind: output, shape index: {}]
  %s4 = sld [smem:[#allocation0]]
  $region26: #{tpu_custom_call.1} parent=0
    _
  %s6 = ssub.s32 1, %s4
  %s7 = scalar_select 0, %s6, %s4
  $region1: #{tpu_custom_call.1} parent=0
    #allocation2 [shape = 'u8[8192]{0}', space=vmem, size = 0x2000, scoped, tag = 'input window, operand 0, single buffered']
    #allocation3 [shape = 's32[1]{0}', space=sflag, size = 0x4, scoped, tag = 'scoped memory for tpu_custom_call.1']
    #allocation4 [shape = 's32[1]{0}', space=sflag, size = 0x4, scoped, tag = 'scoped memory for tpu_custom_call.1']
    #allocation5 [shape = 'u8[8192]{0}', space=vmem, size = 0x2000, scoped, tag = 'output window, operand 0, single buffered']
    %8 = vsyncpa [#allocation3], 0
    %9 = vsyncpa [#allocation4], 0
    // Predicated region
    $region2: #{tpu_custom_call.1} parent=1 // pred_check
      _
    $region3: #{tpu_custom_call.1} parent=1 // pred_check_branch
      %11 = sbr.rel (0) target = $region5
    $region4: #{tpu_custom_call.1} parent=1 // pred_region
      %s13 = ssub.s32 256, 256
      %14 = vsyncadd [#allocation3], %s13
      %s15 = sshll.u32 [#allocation2], 4
      %s16 = int_to_ptr.vmem [resolvable:$true] %s15
      %21 = dma.hbm_to_vmem [thread:$0]  %s0, 256, %s16, [#allocation3], 128, 128, 8
    $region5: #{tpu_custom_call.1} parent=1 // pred_fallthru
      _
    // Predicated region
    $region6: #{tpu_custom_call.1} parent=1 // pred_check
      _
    $region7: #{tpu_custom_call.1} parent=1 // pred_check_branch
      %23 = sbr.rel (0) target = $region9
    $region8: #{tpu_custom_call.1} parent=1 // pred_region
      _
    $region9: #{tpu_custom_call.1} parent=1 // pred_fallthru
      _
    // Predicated region
    $region10: #{tpu_custom_call.1} parent=1 // pred_check
      _
    $region11: #{tpu_custom_call.1} parent=1 // pred_check_branch
      %25 = sbr.rel (0) target = $region13
    $region12: #{tpu_custom_call.1} parent=1 // pred_region
      _
    $region13: #{tpu_custom_call.1} parent=1 // pred_fallthru
      _
    // Predicated region
    $region14: #{tpu_custom_call.1} parent=1 // pred_check
      _
    $region15: #{tpu_custom_call.1} parent=1 // pred_check_branch
      %27 = sbr.rel (0) target = $region17
    $region16: #{tpu_custom_call.1} parent=1 // pred_region
      %28 = dma.done [#allocation3], 256
    $region17: #{tpu_custom_call.1} parent=1 // pred_fallthru
      _
    %v29 = vld [vmem:[#allocation2] sm:$0xff]
    %v30 = vld [vmem:[#allocation2 + $0x8] sm:$0xff]
    %v33 = vcombine.high %v29, %v29
    %v34 = vcombine.high %v30, %v30
    %vm37 = vcmask 1043456
    %v38 = vsel %vm37, %v29, 0.0
    %v39 = vrot.slane %v38, 4
    %v40 = vadd.f32 %v38, %v39
    %v41 = vrot.slane %v40, 2
    %v42 = vadd.f32 %v40, %v41
    %v43 = vrot.slane %v42, 1
    %v44 = vadd.f32 %v42, %v43
    %v45 = vsel %vm37, %v33, 0.0
    %v46 = vrot.slane %v45, 4
    %v47 = vadd.f32 %v45, %v46
    %v48 = vrot.slane %v47, 2
    %v49 = vadd.f32 %v47, %v48
    %v50 = vrot.slane %v49, 1
    %v51 = vadd.f32 %v49, %v50
    %v52 = vsel %vm37, %v30, 0.0
    %v53 = vrot.slane %v52, 4
    %v54 = vadd.f32 %v52, %v53
    %v55 = vrot.slane %v54, 2
    %v56 = vadd.f32 %v54, %v55
    %v57 = vrot.slane %v56, 1
    %v58 = vadd.f32 %v56, %v57
    %v59 = vsel %vm37, %v34, 0.0
    %v60 = vrot.slane %v59, 4
    %v61 = vadd.f32 %v59, %v60
    %v62 = vrot.slane %v61, 2
    %v63 = vadd.f32 %v61, %v62
    %v64 = vrot.slane %v63, 1
    %v65 = vadd.f32 %v63, %v64
    %v66 = vmul.f32 %v44, 0.25
    %v67 = vmul.f32 %v51, 0.25
    %v68 = vmul.f32 %v58, 0.25
    %v69 = vmul.f32 %v65, 0.25
    %v70 = vmul.f32 %v29, %v29
    %v71 = vmul.f32 %v30, %v30
    %v74 = vcombine.high %v70, %v70
    %v75 = vcombine.high %v71, %v71
    %v78 = vsel %vm37, %v70, 0.0
    %v79 = vrot.slane %v78, 4
    %v80 = vadd.f32 %v78, %v79
    %v81 = vrot.slane %v80, 2
    %v82 = vadd.f32 %v80, %v81
    %v83 = vrot.slane %v82, 1
    %v84 = vadd.f32 %v82, %v83
    %v85 = vsel %vm37, %v74, 0.0
    %v86 = vrot.slane %v85, 4
    %v87 = vadd.f32 %v85, %v86
    %v88 = vrot.slane %v87, 2
    %v89 = vadd.f32 %v87, %v88
    %v90 = vrot.slane %v89, 1
    %v91 = vadd.f32 %v89, %v90
    %v92 = vsel %vm37, %v71, 0.0
    %v93 = vrot.slane %v92, 4
    %v94 = vadd.f32 %v92, %v93
    %v95 = vrot.slane %v94, 2
    %v96 = vadd.f32 %v94, %v95
    %v97 = vrot.slane %v96, 1
    %v98 = vadd.f32 %v96, %v97
    %v99 = vsel %vm37, %v75, 0.0
    %v100 = vrot.slane %v99, 4
    %v101 = vadd.f32 %v99, %v100
    %v102 = vrot.slane %v101, 2
    %v103 = vadd.f32 %v101, %v102
    %v104 = vrot.slane %v103, 1
    %v105 = vadd.f32 %v103, %v104
    %v106 = vmul.f32 %v84, 0.25
    %v107 = vmul.f32 %v91, 0.25
    %v108 = vmul.f32 %v98, 0.25
    %v109 = vmul.f32 %v105, 0.25
    %v110 = vmul.f32 %v66, %v66
    %v111 = vmul.f32 %v67, %v67
    %v112 = vmul.f32 %v68, %v68
    %v113 = vmul.f32 %v69, %v69
    %v114 = vsub.f32 %v106, %v110
    %v115 = vsub.f32 %v107, %v111
    %v116 = vsub.f32 %v108, %v112
    %v117 = vsub.f32 %v109, %v113
    %v118 = vadd.f32 %v114, 1e-06
    %v119 = vadd.f32 %v115, 1e-06
    %v120 = vadd.f32 %v116, 1e-06
    %v121 = vadd.f32 %v117, 1e-06
    %v122 = vrsqrt.pop %v118
    %v123 = vrsqrt.pop %v119
    %v124 = vrsqrt.pop %v120
    %v125 = vrsqrt.pop %v121
    %v126 = vld [vmem:[%s1] sm:$0xf]
    %v127 = vld [vmem:[%s2] sm:$0xf]
    %v132 = vcombine.low %v66, %v67
    %v133 = vcombine.low %v68, %v69
    %v136 = vsub.f32 %v29, %v132
    %v137 = vsub.f32 %v30, %v133
    %v142 = vcombine.low %v122, %v123
    %v143 = vcombine.low %v124, %v125
    %v146 = vmul.f32 %v136, %v142
    %v147 = vmul.f32 %v137, %v143
    %149 = vset.pattern.permute.xlu0 0
    %150 = vperm.xlu0 %149, %v126
    %v151 = vpop.permute.xlu0 %150
    %v153 = vunpack.c.l.s4 839922192
    %v154 = vunpack.c.0.s8 %v153
    %v155 = vlaneseq
    %v156 = vshrl.u32 %v155, 7
    %v157 = vsub.s32 %v154, %v156
    %v158 = vrot.slane %v151, %v157
    %v160 = vmul.f32 %v146, %v158
    %v161 = vmul.f32 %v147, %v158
    %163 = vset.pattern.permute.xlu0 0
    %164 = vperm.xlu0 %163, %v127
    %v165 = vpop.permute.xlu0 %164
    %v167 = vunpack.c.l.s4 839922192
    %v168 = vunpack.c.0.s8 %v167
    %v169 = vlaneseq
    %v170 = vshrl.u32 %v169, 7
    %v171 = vsub.s32 %v168, %v170
    %v172 = vrot.slane %v165, %v171
    %v174 = vadd.f32 %v160, %v172
    %v175 = vadd.f32 %v161, %v172
    %176 = vst [vmem:[#allocation5] sm:$0xff] %v174
    %177 = vst [vmem:[#allocation5 + $0x8] sm:$0xff] %v175
    // Predicated region
    $region18: #{tpu_custom_call.1} parent=1 // pred_check
      _
    $region19: #{tpu_custom_call.1} parent=1 // pred_check_branch
      %179 = sbr.rel (0) target = $region21
    $region20: #{tpu_custom_call.1} parent=1 // pred_region
      %s181 = ssub.s32 256, 256
      %182 = vsyncadd [#allocation4], %s181
      %s183 = sshll.u32 [#allocation5], 4
      %s184 = int_to_ptr.vmem [resolvable:$true] %s183
      %189 = dma.vmem_to_hbm [thread:$0]  %s184, 256, %s3, [#allocation4], 128, 128, 8
    $region21: #{tpu_custom_call.1} parent=1 // pred_fallthru
      _
    // Predicated region
    $region22: #{tpu_custom_call.1} parent=1 // pred_check
      _
    $region23: #{tpu_custom_call.1} parent=1 // pred_check_branch
      %191 = sbr.rel (0) target = $region25
    $region24: #{tpu_custom_call.1} parent=1 // pred_region
      %192 = dma.done [#allocation4], 256
    $region25: #{tpu_custom_call.1} parent=1 // pred_fallthru
      _
    %193 = vsyncpa [#allocation3], 1
    %194 = vsyncpa [#allocation4], 1

</llo_original>
